<compile_context>
chip_gen: v7x
topology: tpu7x:2x2x1
jax: 0.10.0
libtpu: 0.0.40
codegen_flags: <defaults>
</compile_context>

<pallas_src>
import jax
import jax.numpy as jnp
from jax.experimental import pallas as pl
from jax.experimental.pallas import tpu as pltpu


def gnn_forward(node_rep, G, params):
    """Pallas implementation of GNN.forward(node_rep, G) (attention=False, M=None)."""
    B, N, D = node_rep.shape
    w1, b1, w2, b2, w3, b3, w4, b4, w5, b5 = params
    H = w1.shape[1]
    NH = N * H
    ND = N * D
    f32 = jnp.float32

    # ---------------- tile sizing ----------------
    PACKED_ROWS_TARGET = 2048      # (b, i) matmul rows per grid step (= N * that many edges)
    MIN_SPLIT_ROWS = 512           # only split for megacore if each tile keeps this many rows

    bt = max(1, min(B, PACKED_ROWS_TARGET // N))
    if B > 1 and bt >= B and (B * N) // 2 >= MIN_SPLIT_ROWS:
        bt = (B + 1) // 2          # keep >=2 tiles so both v7x TensorCores get work
    T = -(-B // bt)                # ceil
    B_pad = T * bt

    node = node_rep.astype(f32)
    if B_pad != B:                 # zero-pad batch; padded rows are finite and sliced off
        node = jnp.concatenate([node, jnp.zeros((B_pad - B, N, D), f32)], axis=0)

    # ---------------- wrapper-side glue (constants & layouts) ----------------
    # Streamed node data in two layouts:  node3[t, (b,i), d]  and  nodepk3[t, b, (j,d)]
    node3 = node.reshape(T, bt * N, D)
    nodepk3 = node.reshape(T, bt, ND)

    def blockdiag(w):                                   # (a, c) -> (N*a, N*c), W on the diagonal
        return jnp.kron(jnp.eye(N, dtype=f32), w.astype(f32))

    w1a = w1[:D].astype(f32)                            # acts on node_i
    w1b = w1[D:].astype(f32)                            # acts on node_j
    w1a_t = jnp.tile(w1a, (1, N))                       # (D, N*H): every lane block j = W1a
    w1b_bd = blockdiag(w1b)                             # (N*D, N*H)
    w2bd, w3bd, w4bd = blockdiag(w2), blockdiag(w3), blockdiag(w4)
    b1_t = jnp.tile(b1.astype(f32), (1, N))             # (1, N*H)
    b2_t = jnp.tile(b2.astype(f32), (1, N))
    b3_t = jnp.tile(b3.astype(f32), (1, N))
    b4_t = jnp.tile(b4.astype(f32), (1, N))

    # EB[(b,i), b'] = 1{b==b'} (per-batch sublane broadcast); S2 = EB.T (per-batch sum over i)
    EB = jnp.repeat(jnp.eye(bt, dtype=f32), N, axis=0)  # (bt*N, bt)
    S2 = EB.T                                           # (bt, bt*N)

    # Fused final Linear(H, n_out) + masked mean:
    #   R_b = sum_{i,j} M_ij * (h4[b,i,j] . sum_o W5[:,o]) / sum(M) + sum_o b5_o
    m = (1.0 - G[:, :, 0]).astype(f32)                  # (N, N) mask (batch-independent)
    msum = jnp.sum(m)
    w5row = jnp.sum(w5.astype(f32), axis=1)             # (H,)
    wm_base = (m[:, :, None] * w5row[None, None, :] / msum).reshape(N, NH)
    WM = jnp.tile(wm_base, (bt, 1))                     # (bt*N, N*H): row (b,i), block j = M_ij*w5row/msum
    b5s = jnp.sum(b5).astype(f32).reshape(1, 1)

    # ---------------- kernel ----------------
    def kernel(node_ref, nodepk_ref, eb_ref, s2_ref, wm_ref,
               w1a_ref, w1b_ref, b1_ref, w2_ref, b2_ref,
               w3_ref, b3_ref, w4_ref, b4_ref, b5_ref, out_ref):
        nodes = node_ref[0]                              # (bt*N, D)
        nodepk = nodepk_ref[0]                           # (bt, N*D)

        # Layer 1 via linearity: lane block j of row (b,i) = relu(p_i + q_j + b1)
        p = jnp.dot(nodes, w1a_ref[...], preferred_element_type=jnp.float32)     # (bt*N, N*H)
        qf = jnp.dot(nodepk, w1b_ref[...], preferred_element_type=jnp.float32)   # (bt, N*H)
        qf = qf + b1_ref[...]
        qb = jnp.dot(eb_ref[...], qf, preferred_element_type=jnp.float32)        # (bt*N, N*H)
        h = jnp.maximum(p + qb, 0.0)

        # Layers 2..4: block-diagonal weights == N independent H->H linears per lane block
        h = jnp.maximum(jnp.dot(h, w2_ref[...], preferred_element_type=jnp.float32) + b2_ref[...], 0.0)
        h = jnp.maximum(jnp.dot(h, w3_ref[...], preferred_element_type=jnp.float32) + b3_ref[...], 0.0)
        h = jnp.maximum(jnp.dot(h, w4_ref[...], preferred_element_type=jnp.float32) + b4_ref[...], 0.0)

        # Fused final layer + masked mean (1/sum(mask) already folded into wm_ref -> no divide/NaN)
        g = h * wm_ref[...]                                                       # (bt*N, N*H)
        nv = jnp.dot(s2_ref[...], g, preferred_element_type=jnp.float32)          # (bt, N*H)
        r = jnp.sum(nv, axis=1, keepdims=True) + b5_ref[...]                      # (bt, 1)

        # Lane-dense writeback; the wrapper reads column 0.
        out_ref[0] = jnp.broadcast_to(r, out_ref.shape[1:]).astype(out_ref.dtype)

    def full_spec(a):
        nd = a.ndim
        return pl.BlockSpec(a.shape, lambda t, _nd=nd: (0,) * _nd)

    out = pl.pallas_call(
        kernel,
        out_shape=jax.ShapeDtypeStruct((T, bt, 128), jnp.float32),
        grid_spec=pltpu.PrefetchScalarGridSpec(
            num_scalar_prefetch=0,
            grid=(T,),
            in_specs=[
                pl.BlockSpec((1, bt * N, D), lambda t: (t, 0, 0)),   # node rows (streamed)
                pl.BlockSpec((1, bt, ND), lambda t: (t, 0, 0)),      # per-batch packed nodes (streamed)
                full_spec(EB), full_spec(S2), full_spec(WM),
                full_spec(w1a_t), full_spec(w1b_bd), full_spec(b1_t),
                full_spec(w2bd), full_spec(b2_t),
                full_spec(w3bd), full_spec(b3_t),
                full_spec(w4bd), full_spec(b4_t),
                full_spec(b5s),
            ],
            out_specs=pl.BlockSpec((1, bt, 128), lambda t: (t, 0, 0)),
        ),
        compiler_params=pltpu.CompilerParams(
            dimension_semantics=("parallel",),
            vmem_limit_bytes=40 * 1024 * 1024,
        ),
    )(node3, nodepk3, EB, S2, WM, w1a_t, w1b_bd, b1_t,
      w2bd, b2_t, w3bd, b3_t, w4bd, b4_t, b5s)

    return out[:, :, 0].reshape(B_pad)[:B]                           # (B,)


def gnn_reference(node_rep, G, params):
    """Pure-JAX reference mirroring the PyTorch forward (attention=False, M=None)."""
    B, N, D = node_rep.shape
    w1, b1, w2, b2, w3, b3, w4, b4, w5, b5 = params
    n1 = jnp.broadcast_to(node_rep[:, :, None, :], (B, N, N, D))
    n2 = jnp.broadcast_to(node_rep[:, None, :, :], (B, N, N, D))
    e = jnp.concatenate([n1, n2], axis=-1)            # (B, N, N, 2D)
    h = jax.nn.relu(e @ w1 + b1)
    h = jax.nn.relu(h @ w2 + b2)
    h = jax.nn.relu(h @ w3 + b3)
    h = jax.nn.relu(h @ w4 + b4)
    y = h @ w5 + b5                                   # (B, N, N, n_out)
    M = jnp.broadcast_to(1.0 - G[None, :, :, 0], (B, N, N))[..., None]
    return jnp.sum(M * y, axis=(1, 2, 3)) / jnp.sum(M, axis=(1, 2, 3))


if __name__ == "__main__":
    key = jax.random.PRNGKey(0)
    B, N = 2, 8                    # batch, number of nodes
    node_dim_in = 6
    n_hidden, n_out = 32, 1
    edge_type_num = 2

    keys = jax.random.split(key, 12)

    def init_linear(kw, kb, fan_in, fan_out):
        # Same distribution as PyTorch nn.Linear default: U(-1/sqrt(in), 1/sqrt(in)).
        bound = 1.0 / float(fan_in) ** 0.5
        w = jax.random.uniform(kw, (fan_in, fan_out), jnp.float32, -bound, bound)
        b = jax.random.uniform(kb, (1, fan_out), jnp.float32, -bound, bound)
        return w, b

    w1, b1 = init_linear(keys[0], keys[1], 2 * node_dim_in, n_hidden)
    w2, b2 = init_linear(keys[2], keys[3], n_hidden, n_hidden)
    w3, b3 = init_linear(keys[4], keys[5], n_hidden, n_hidden)
    w4, b4 = init_linear(keys[6], keys[7], n_hidden, n_hidden)
    w5, b5 = init_linear(keys[8], keys[9], n_hidden, n_out)
    params = (w1, b1, w2, b2, w3, b3, w4, b4, w5, b5)

    node_rep = jax.random.normal(keys[10], (B, N, node_dim_in), jnp.float32)
    G = jax.random.uniform(keys[11], (N, N, edge_type_num), jnp.float32)

    out = jax.block_until_ready(gnn_forward(node_rep, G, params))
    ref = gnn_reference(node_rep, G, params)
    assert out.shape == (B,)
    assert jnp.allclose(out, ref, atol=1e-4, rtol=1e-4), (out, ref)
    print("KERNEL_OK")
</pallas_src>

<mosaic_0001>
module attributes {stable_mosaic.version = 11 : i64} {
  func.func @kernel(%arg0: i32, %arg1: memref<1x16x6xf32, #tpu.memory_space<vmem>>, %arg2: memref<1x2x48xf32, #tpu.memory_space<vmem>>, %arg3: memref<16x2xf32, #tpu.memory_space<vmem>>, %arg4: memref<2x16xf32, #tpu.memory_space<vmem>>, %arg5: memref<16x256xf32, #tpu.memory_space<vmem>>, %arg6: memref<6x256xf32, #tpu.memory_space<vmem>>, %arg7: memref<48x256xf32, #tpu.memory_space<vmem>>, %arg8: memref<1x256xf32, #tpu.memory_space<vmem>>, %arg9: memref<256x256xf32, #tpu.memory_space<vmem>>, %arg10: memref<1x256xf32, #tpu.memory_space<vmem>>, %arg11: memref<256x256xf32, #tpu.memory_space<vmem>>, %arg12: memref<1x256xf32, #tpu.memory_space<vmem>>, %arg13: memref<256x256xf32, #tpu.memory_space<vmem>>, %arg14: memref<1x256xf32, #tpu.memory_space<vmem>>, %arg15: memref<1x1xf32, #tpu.memory_space<vmem>>, %arg16: memref<1x2x128xf32, #tpu.memory_space<vmem>>) attributes {dimension_semantics = [#tpu.dimension_semantics<parallel>], iteration_bounds = array<i64: 1>, scalar_prefetch = 0 : i64, scratch_operands = 0 : i64, tpu.core_type = #tpu.core_type<tc>, window_params = [{transform_indices = @transform_0, window_bounds = array<i64: 1, 16, 6>}, {transform_indices = @transform_1, window_bounds = array<i64: 1, 2, 48>}, {pipeline_mode = #tpu.pipeline_mode<synchronous>, transform_indices = @transform_2, window_bounds = array<i64: 16, 2>}, {pipeline_mode = #tpu.pipeline_mode<synchronous>, transform_indices = @transform_3, window_bounds = array<i64: 2, 16>}, {pipeline_mode = #tpu.pipeline_mode<synchronous>, transform_indices = @transform_4, window_bounds = array<i64: 16, 256>}, {pipeline_mode = #tpu.pipeline_mode<synchronous>, transform_indices = @transform_5, window_bounds = array<i64: 6, 256>}, {pipeline_mode = #tpu.pipeline_mode<synchronous>, transform_indices = @transform_6, window_bounds = array<i64: 48, 256>}, {pipeline_mode = #tpu.pipeline_mode<synchronous>, transform_indices = @transform_7, window_bounds = array<i64: 1, 256>}, {pipeline_mode = #tpu.pipeline_mode<synchronous>, transform_indices = @transform_8, window_bounds = array<i64: 256, 256>}, {pipeline_mode = #tpu.pipeline_mode<synchronous>, transform_indices = @transform_9, window_bounds = array<i64: 1, 256>}, {pipeline_mode = #tpu.pipeline_mode<synchronous>, transform_indices = @transform_10, window_bounds = array<i64: 256, 256>}, {pipeline_mode = #tpu.pipeline_mode<synchronous>, transform_indices = @transform_11, window_bounds = array<i64: 1, 256>}, {pipeline_mode = #tpu.pipeline_mode<synchronous>, transform_indices = @transform_12, window_bounds = array<i64: 256, 256>}, {pipeline_mode = #tpu.pipeline_mode<synchronous>, transform_indices = @transform_13, window_bounds = array<i64: 1, 256>}, {pipeline_mode = #tpu.pipeline_mode<synchronous>, transform_indices = @transform_14, window_bounds = array<i64: 1, 1>}, {transform_indices = @transform_15, window_bounds = array<i64: 1, 2, 128>}]} {
    %c0 = arith.constant 0 : index
    %c0_0 = arith.constant 0 : index
    %c0_1 = arith.constant 0 : index
    %0 = vector.load %arg1[%c0, %c0_0, %c0_1] : memref<1x16x6xf32, #tpu.memory_space<vmem>>, vector<1x16x6xf32>
    %1 = vector.shape_cast %0 : vector<1x16x6xf32> to vector<16x6xf32>
    %c0_2 = arith.constant 0 : index
    %c0_3 = arith.constant 0 : index
    %c0_4 = arith.constant 0 : index
    %2 = vector.load %arg2[%c0_2, %c0_3, %c0_4] : memref<1x2x48xf32, #tpu.memory_space<vmem>>, vector<1x2x48xf32>
    %3 = vector.shape_cast %2 : vector<1x2x48xf32> to vector<2x48xf32>
    %c0_5 = arith.constant 0 : index
    %c0_6 = arith.constant 0 : index
    %4 = vector.load %arg6[%c0_5, %c0_6] : memref<6x256xf32, #tpu.memory_space<vmem>>, vector<6x256xf32>
    %cst = arith.constant dense<0.000000e+00> : vector<16x256xf32>
    %5 = tpu.matmul %1, %4, %cst {dimension_numbers = #tpu.dot_dimension_numbers<[1], [0], [0], [1], [0, 0, 1, 1], [], []>} : vector<16x6xf32>, vector<6x256xf32>, vector<16x256xf32> -> vector<16x256xf32>
    %c0_7 = arith.constant 0 : index
    %c0_8 = arith.constant 0 : index
    %6 = vector.load %arg7[%c0_7, %c0_8] : memref<48x256xf32, #tpu.memory_space<vmem>>, vector<48x256xf32>
    %cst_9 = arith.constant dense<0.000000e+00> : vector<2x256xf32>
    %7 = tpu.matmul %3, %6, %cst_9 {dimension_numbers = #tpu.dot_dimension_numbers<[1], [0], [0], [1], [0, 0, 1, 1], [], []>} : vector<2x48xf32>, vector<48x256xf32>, vector<2x256xf32> -> vector<2x256xf32>
    %c0_10 = arith.constant 0 : index
    %c0_11 = arith.constant 0 : index
    %8 = vector.load %arg8[%c0_10, %c0_11] : memref<1x256xf32, #tpu.memory_space<vmem>>, vector<1x256xf32>
    %9 = vector.broadcast %8 : vector<1x256xf32> to vector<2x256xf32>
    %10 = arith.addf %7, %9 : vector<2x256xf32>
    %c0_12 = arith.constant 0 : index
    %c0_13 = arith.constant 0 : index
    %11 = vector.load %arg3[%c0_12, %c0_13] : memref<16x2xf32, #tpu.memory_space<vmem>>, vector<16x2xf32>
    %cst_14 = arith.constant dense<0.000000e+00> : vector<16x256xf32>
    %12 = tpu.matmul %11, %10, %cst_14 {dimension_numbers = #tpu.dot_dimension_numbers<[1], [0], [0], [1], [0, 0, 1, 1], [], []>} : vector<16x2xf32>, vector<2x256xf32>, vector<16x256xf32> -> vector<16x256xf32>
    %13 = arith.addf %5, %12 : vector<16x256xf32>
    %cst_15 = arith.constant 0.000000e+00 : f32
    %14 = vector.broadcast %cst_15 : f32 to vector<16x256xf32>
    %15 = arith.maximumf %13, %14 : vector<16x256xf32>
    %c0_16 = arith.constant 0 : index
    %c0_17 = arith.constant 0 : index
    %16 = vector.load %arg9[%c0_16, %c0_17] : memref<256x256xf32, #tpu.memory_space<vmem>>, vector<256x256xf32>
    %cst_18 = arith.constant dense<0.000000e+00> : vector<16x256xf32>
    %17 = tpu.matmul %15, %16, %cst_18 {dimension_numbers = #tpu.dot_dimension_numbers<[1], [0], [0], [1], [0, 0, 1, 1], [], []>} : vector<16x256xf32>, vector<256x256xf32>, vector<16x256xf32> -> vector<16x256xf32>
    %c0_19 = arith.constant 0 : index
    %c0_20 = arith.constant 0 : index
    %18 = vector.load %arg10[%c0_19, %c0_20] : memref<1x256xf32, #tpu.memory_space<vmem>>, vector<1x256xf32>
    %19 = vector.broadcast %18 : vector<1x256xf32> to vector<16x256xf32>
    %20 = arith.addf %17, %19 : vector<16x256xf32>
    %cst_21 = arith.constant 0.000000e+00 : f32
    %21 = vector.broadcast %cst_21 : f32 to vector<16x256xf32>
    %22 = arith.maximumf %20, %21 : vector<16x256xf32>
    %c0_22 = arith.constant 0 : index
    %c0_23 = arith.constant 0 : index
    %23 = vector.load %arg11[%c0_22, %c0_23] : memref<256x256xf32, #tpu.memory_space<vmem>>, vector<256x256xf32>
    %cst_24 = arith.constant dense<0.000000e+00> : vector<16x256xf32>
    %24 = tpu.matmul %22, %23, %cst_24 {dimension_numbers = #tpu.dot_dimension_numbers<[1], [0], [0], [1], [0, 0, 1, 1], [], []>} : vector<16x256xf32>, vector<256x256xf32>, vector<16x256xf32> -> vector<16x256xf32>
    %c0_25 = arith.constant 0 : index
    %c0_26 = arith.constant 0 : index
    %25 = vector.load %arg12[%c0_25, %c0_26] : memref<1x256xf32, #tpu.memory_space<vmem>>, vector<1x256xf32>
    %26 = vector.broadcast %25 : vector<1x256xf32> to vector<16x256xf32>
    %27 = arith.addf %24, %26 : vector<16x256xf32>
    %cst_27 = arith.constant 0.000000e+00 : f32
    %28 = vector.broadcast %cst_27 : f32 to vector<16x256xf32>
    %29 = arith.maximumf %27, %28 : vector<16x256xf32>
    %c0_28 = arith.constant 0 : index
    %c0_29 = arith.constant 0 : index
    %30 = vector.load %arg13[%c0_28, %c0_29] : memref<256x256xf32, #tpu.memory_space<vmem>>, vector<256x256xf32>
    %cst_30 = arith.constant dense<0.000000e+00> : vector<16x256xf32>
    %31 = tpu.matmul %29, %30, %cst_30 {dimension_numbers = #tpu.dot_dimension_numbers<[1], [0], [0], [1], [0, 0, 1, 1], [], []>} : vector<16x256xf32>, vector<256x256xf32>, vector<16x256xf32> -> vector<16x256xf32>
    %c0_31 = arith.constant 0 : index
    %c0_32 = arith.constant 0 : index
    %32 = vector.load %arg14[%c0_31, %c0_32] : memref<1x256xf32, #tpu.memory_space<vmem>>, vector<1x256xf32>
    %33 = vector.broadcast %32 : vector<1x256xf32> to vector<16x256xf32>
    %34 = arith.addf %31, %33 : vector<16x256xf32>
    %cst_33 = arith.constant 0.000000e+00 : f32
    %35 = vector.broadcast %cst_33 : f32 to vector<16x256xf32>
    %36 = arith.maximumf %34, %35 : vector<16x256xf32>
    %c0_34 = arith.constant 0 : index
    %c0_35 = arith.constant 0 : index
    %37 = vector.load %arg5[%c0_34, %c0_35] : memref<16x256xf32, #tpu.memory_space<vmem>>, vector<16x256xf32>
    %38 = arith.mulf %36, %37 : vector<16x256xf32>
    %c0_36 = arith.constant 0 : index
    %c0_37 = arith.constant 0 : index
    %39 = vector.load %arg4[%c0_36, %c0_37] : memref<2x16xf32, #tpu.memory_space<vmem>>, vector<2x16xf32>
    %cst_38 = arith.constant dense<0.000000e+00> : vector<2x256xf32>
    %40 = tpu.matmul %39, %38, %cst_38 {dimension_numbers = #tpu.dot_dimension_numbers<[1], [0], [0], [1], [0, 0, 1, 1], [], []>} : vector<2x16xf32>, vector<16x256xf32>, vector<2x256xf32> -> vector<2x256xf32>
    %cst_39 = arith.constant dense<0.000000e+00> : vector<2xf32>
    %41 = vector.multi_reduction <add>, %40, %cst_39 [1] : vector<2x256xf32> to vector<2xf32>
    %42 = vector.shape_cast %41 : vector<2xf32> to vector<2x1xf32>
    %c0_40 = arith.constant 0 : index
    %c0_41 = arith.constant 0 : index
    %43 = vector.load %arg15[%c0_40, %c0_41] : memref<1x1xf32, #tpu.memory_space<vmem>>, vector<1x1xf32>
    %44 = vector.broadcast %43 : vector<1x1xf32> to vector<2x1xf32>
    %45 = arith.addf %42, %44 : vector<2x1xf32>
    %46 = vector.shape_cast %45 : vector<2x1xf32> to vector<2x1xf32>
    %47 = vector.broadcast %46 : vector<2x1xf32> to vector<2x128xf32>
    %c0_42 = arith.constant 0 : index
    %c0_43 = arith.constant 0 : index
    %c0_44 = arith.constant 0 : index
    %48 = vector.load %arg16[%c0_42, %c0_43, %c0_44] : memref<1x2x128xf32, #tpu.memory_space<vmem>>, vector<1x2x128xf32>
    %49 = vector.shape_cast %48 : vector<1x2x128xf32> to vector<2x128xf32>
    %50 = vector.shape_cast %47 : vector<2x128xf32> to vector<1x2x128xf32>
    tpu.vector_store %arg16[%c0_42, %c0_43, %c0_44], %50 {strides = array<i32>} : memref<1x2x128xf32, #tpu.memory_space<vmem>>, vector<1x2x128xf32>,
    return
  }
  func.func @transform_0(%arg0: i32) -> (i32, i32, i32) {
    %c0_i32 = arith.constant 0 : i32
    %c0_i32_0 = arith.constant 0 : i32
    %c0_i32_1 = arith.constant 0 : i32
    return %arg0, %c0_i32, %c0_i32_0 : i32, i32, i32
  }
  func.func @transform_1(%arg0: i32) -> (i32, i32, i32) {
    %c0_i32 = arith.constant 0 : i32
    %c0_i32_0 = arith.constant 0 : i32
    %c0_i32_1 = arith.constant 0 : i32
    return %arg0, %c0_i32, %c0_i32_0 : i32, i32, i32
  }
  func.func @transform_2(%arg0: i32) -> (i32, i32) {
    %c0_i32 = arith.constant 0 : i32
    %c0_i32_0 = arith.constant 0 : i32
    %c0_i32_1 = arith.constant 0 : i32
    return %c0_i32, %c0_i32_0 : i32, i32
  }
  func.func @transform_3(%arg0: i32) -> (i32, i32) {
    %c0_i32 = arith.constant 0 : i32
    %c0_i32_0 = arith.constant 0 : i32
    %c0_i32_1 = arith.constant 0 : i32
    return %c0_i32, %c0_i32_0 : i32, i32
  }
  func.func @transform_4(%arg0: i32) -> (i32, i32) {
    %c0_i32 = arith.constant 0 : i32
    %c0_i32_0 = arith.constant 0 : i32
    %c0_i32_1 = arith.constant 0 : i32
    return %c0_i32, %c0_i32_0 : i32, i32
  }
  func.func @transform_5(%arg0: i32) -> (i32, i32) {
    %c0_i32 = arith.constant 0 : i32
    %c0_i32_0 = arith.constant 0 : i32
    %c0_i32_1 = arith.constant 0 : i32
    return %c0_i32, %c0_i32_0 : i32, i32
  }
  func.func @transform_6(%arg0: i32) -> (i32, i32) {
    %c0_i32 = arith.constant 0 : i32
    %c0_i32_0 = arith.constant 0 : i32
    %c0_i32_1 = arith.constant 0 : i32
    return %c0_i32, %c0_i32_0 : i32, i32
  }
  func.func @transform_7(%arg0: i32) -> (i32, i32) {
    %c0_i32 = arith.constant 0 : i32
    %c0_i32_0 = arith.constant 0 : i32
    %c0_i32_1 = arith.constant 0 : i32
    return %c0_i32, %c0_i32_0 : i32, i32
  }
  func.func @transform_8(%arg0: i32) -> (i32, i32) {
    %c0_i32 = arith.constant 0 : i32
    %c0_i32_0 = arith.constant 0 : i32
    %c0_i32_1 = arith.constant 0 : i32
    return %c0_i32, %c0_i32_0 : i32, i32
  }
  func.func @transform_9(%arg0: i32) -> (i32, i32) {
    %c0_i32 = arith.constant 0 : i32
    %c0_i32_0 = arith.constant 0 : i32
    %c0_i32_1 = arith.constant 0 : i32
    return %c0_i32, %c0_i32_0 : i32, i32
  }
  func.func @transform_10(%arg0: i32) -> (i32, i32) {
    %c0_i32 = arith.constant 0 : i32
    %c0_i32_0 = arith.constant 0 : i32
    %c0_i32_1 = arith.constant 0 : i32
    return %c0_i32, %c0_i32_0 : i32, i32
  }
  func.func @transform_11(%arg0: i32) -> (i32, i32) {
    %c0_i32 = arith.constant 0 : i32
    %c0_i32_0 = arith.constant 0 : i32
    %c0_i32_1 = arith.constant 0 : i32
    return %c0_i32, %c0_i32_0 : i32, i32
  }
  func.func @transform_12(%arg0: i32) -> (i32, i32) {
    %c0_i32 = arith.constant 0 : i32
    %c0_i32_0 = arith.constant 0 : i32
    %c0_i32_1 = arith.constant 0 : i32
    return %c0_i32, %c0_i32_0 : i32, i32
  }
  func.func @transform_13(%arg0: i32) -> (i32, i32) {
    %c0_i32 = arith.constant 0 : i32
    %c0_i32_0 = arith.constant 0 : i32
    %c0_i32_1 = arith.constant 0 : i32
    return %c0_i32, %c0_i32_0 : i32, i32
  }
  func.func @transform_14(%arg0: i32) -> (i32, i32) {
    %c0_i32 = arith.constant 0 : i32
    %c0_i32_0 = arith.constant 0 : i32
    %c0_i32_1 = arith.constant 0 : i32
    return %c0_i32, %c0_i32_0 : i32, i32
  }
  func.func @transform_15(%arg0: i32) -> (i32, i32, i32) {
    %c0_i32 = arith.constant 0 : i32
    %c0_i32_0 = arith.constant 0 : i32
    %c0_i32_1 = arith.constant 0 : i32
    return %arg0, %c0_i32, %c0_i32_0 : i32, i32, i32
  }
}

</mosaic_0001>

<llo_original>
// kernel: tpu_custom_call.1
$region0: #{tpu_custom_call.1}
  #allocation0 [shape = 'u32[]', space=smem, size = 0x4, offset = 0x4, fixed_abs, tag = 'smem constant byte address 0x4 - core index']
  #allocation1 [shape = 'u32[144,128]{1,0:T(1,128)}', space=vmem, size = 0x12000, scoped, tag = 'internal scratch']
  #allocation2 [shape = 'f32[1,1]{1,0:T(1,128)S(1)}', space=vmem, size = 0x200, scoped, tag = 'scoped memory for tpu_custom_call.1']
  %s0 = inlined_call_operand.vmem [shape: f32[1,16,6], index: 0, kind: input, shape index: {}]
  %s1 = inlined_call_operand.vmem [shape: f32[1,2,48], index: 1, kind: input, shape index: {}]
  %s2 = inlined_call_operand.vmem [shape: f32[16,2], index: 2, kind: input, shape index: {}]
  %s3 = inlined_call_operand.vmem [shape: f32[2,16], index: 3, kind: input, shape index: {}]
  %s4 = inlined_call_operand.vmem [shape: f32[16,256], index: 4, kind: input, shape index: {}]
  %s5 = inlined_call_operand.vmem [shape: f32[6,256], index: 5, kind: input, shape index: {}]
  %s6 = inlined_call_operand.hbm [shape: f32[48,256], index: 6, kind: input, shape index: {}]
  %s7 = inlined_call_operand.vmem [shape: f32[1,256], index: 7, kind: input, shape index: {}]
  %s8 = inlined_call_operand.hbm [shape: f32[256,256], index: 8, kind: input, shape index: {}]
  %s9 = inlined_call_operand.vmem [shape: f32[1,256], index: 9, kind: input, shape index: {}]
  %s10 = inlined_call_operand.hbm [shape: f32[256,256], index: 10, kind: input, shape index: {}]
  %s11 = inlined_call_operand.vmem [shape: f32[1,256], index: 11, kind: input, shape index: {}]
  %s12 = inlined_call_operand.hbm [shape: f32[256,256], index: 12, kind: input, shape index: {}]
  %s13 = inlined_call_operand.vmem [shape: f32[1,256], index: 13, kind: input, shape index: {}]
  %s14 = inlined_call_operand.<no memory space> [shape: f32[1,1], index: 14, kind: input, shape index: {}]
  %s15 = inlined_call_operand.hbm [shape: f32[1,2,128], index: 15, kind: output, shape index: {}]
  %s16 = sld [smem:[#allocation0]]
  $region86: #{tpu_custom_call.1} parent=0
    _
  %s18 = ssub.s32 1, %s16
  %s19 = scalar_select 0, %s18, %s16
  %v20 = vstv %s14
  %21 = vst [vmem:[#allocation2] sm:$0x1] %v20
  $region1: #{tpu_custom_call.1} parent=0
    #allocation3 [shape = 'u8[49152]{0}', space=vmem, size = 0xc000, scoped, tag = 'input window, operand 6, single buffered']
    #allocation4 [shape = 's32[1]{0}', space=sflag, size = 0x4, scoped, tag = 'scoped memory for tpu_custom_call.1']
    #allocation5 [shape = 's32[1]{0}', space=sflag, size = 0x4, scoped, tag = 'scoped memory for tpu_custom_call.1']
    #allocation6 [shape = 'u8[262144]{0}', space=vmem, size = 0x40000, scoped, tag = 'input window, operand 8, single buffered']
    #allocation7 [shape = 's32[1]{0}', space=sflag, size = 0x4, scoped, tag = 'scoped memory for tpu_custom_call.1']
    #allocation8 [shape = 'u8[262144]{0}', space=vmem, size = 0x40000, scoped, tag = 'input window, operand 10, single buffered']
    #allocation9 [shape = 'u8[262144]{0}', space=vmem, size = 0x40000, scoped, tag = 'input window, operand 12, single buffered']
    #allocation10 [shape = 's32[1]{0}', space=sflag, size = 0x4, scoped, tag = 'scoped memory for tpu_custom_call.1']
    #allocation11 [shape = 'u8[1024]{0}', space=vmem, size = 0x400, scoped, tag = 'output window, operand 0, single buffered']
    %22 = vsyncpa [#allocation4], 0
    %23 = vsyncpa [#allocation7], 0
    %24 = vsyncpa [#allocation10], 0
    %25 = vsyncpa [#allocation5], 0
    // Predicated region
    $region2: #{tpu_custom_call.1} parent=1 // pred_check
      _
    $region3: #{tpu_custom_call.1} parent=1 // pred_check_branch
      %27 = sbr.rel (0) target = $region5
    $region4: #{tpu_custom_call.1} parent=1 // pred_region
      _
    $region5: #{tpu_custom_call.1} parent=1 // pred_fallthru
      _
    // Predicated region
    $region6: #{tpu_custom_call.1} parent=1 // pred_check
      _
    $region7: #{tpu_custom_call.1} parent=1 // pred_check_branch
      %29 = sbr.rel (0) target = $region9
    $region8: #{tpu_custom_call.1} parent=1 // pred_region
      _
    $region9: #{tpu_custom_call.1} parent=1 // pred_fallthru
      _
    // Predicated region
    $region10: #{tpu_custom_call.1} parent=1 // pred_check
      _
    $region11: #{tpu_custom_call.1} parent=1 // pred_check_branch
      %31 = sbr.rel (0) target = $region13
    $region12: #{tpu_custom_call.1} parent=1 // pred_region
      _
    $region13: #{tpu_custom_call.1} parent=1 // pred_fallthru
      _
    // Predicated region
    $region14: #{tpu_custom_call.1} parent=1 // pred_check
      _
    $region15: #{tpu_custom_call.1} parent=1 // pred_check_branch
      %33 = sbr.rel (0) target = $region17
    $region16: #{tpu_custom_call.1} parent=1 // pred_region
      _
    $region17: #{tpu_custom_call.1} parent=1 // pred_fallthru
      _
    // Predicated region
    $region18: #{tpu_custom_call.1} parent=1 // pred_check
      _
    $region19: #{tpu_custom_call.1} parent=1 // pred_check_branch
      %35 = sbr.rel (0) target = $region21
    $region20: #{tpu_custom_call.1} parent=1 // pred_region
      _
    $region21: #{tpu_custom_call.1} parent=1 // pred_fallthru
      _
    // Predicated region
    $region22: #{tpu_custom_call.1} parent=1 // pred_check
      _
    $region23: #{tpu_custom_call.1} parent=1 // pred_check_branch
      %37 = sbr.rel (0) target = $region25
    $region24: #{tpu_custom_call.1} parent=1 // pred_region
      _
    $region25: #{tpu_custom_call.1} parent=1 // pred_fallthru
      _
    // Predicated region
    $region26: #{tpu_custom_call.1} parent=1 // pred_check
      _
    $region27: #{tpu_custom_call.1} parent=1 // pred_check_branch
      %39 = sbr.rel (0) target = $region29
    $region28: #{tpu_custom_call.1} parent=1 // pred_region
      %s41 = ssub.s32 1536, 1536
      %42 = vsyncadd [#allocation4], %s41
      %s43 = sshll.u32 [#allocation3], 4
      %s44 = int_to_ptr.vmem [resolvable:$true] %s43
      %49 = dma.hbm_to_vmem [thread:$0]  %s6, 1536, %s44, [#allocation4], 256, 256, 16
    $region29: #{tpu_custom_call.1} parent=1 // pred_fallthru
      _
    // Predicated region
    $region30: #{tpu_custom_call.1} parent=1 // pred_check
      _
    $region31: #{tpu_custom_call.1} parent=1 // pred_check_branch
      %51 = sbr.rel (0) target = $region33
    $region32: #{tpu_custom_call.1} parent=1 // pred_region
      _
    $region33: #{tpu_custom_call.1} parent=1 // pred_fallthru
      _
    // Predicated region
    $region34: #{tpu_custom_call.1} parent=1 // pred_check
      _
    $region35: #{tpu_custom_call.1} parent=1 // pred_check_branch
      %53 = sbr.rel (0) target = $region37
    $region36: #{tpu_custom_call.1} parent=1 // pred_region
      %s55 = ssub.s32 8192, 8192
      %56 = vsyncadd [#allocation7], %s55
      %s57 = sshll.u32 [#allocation6], 4
      %s58 = int_to_ptr.vmem [resolvable:$true] %s57
      %63 = dma.hbm_to_vmem [thread:$0]  %s8, 8192, %s58, [#allocation7], 256, 256, 16
    $region37: #{tpu_custom_call.1} parent=1 // pred_fallthru
      _
    // Predicated region
    $region38: #{tpu_custom_call.1} parent=1 // pred_check
      _
    $region39: #{tpu_custom_call.1} parent=1 // pred_check_branch
      %65 = sbr.rel (0) target = $region41
    $region40: #{tpu_custom_call.1} parent=1 // pred_region
      _
    $region41: #{tpu_custom_call.1} parent=1 // pred_fallthru
      _
    // Predicated region
    $region42: #{tpu_custom_call.1} parent=1 // pred_check
      _
    $region43: #{tpu_custom_call.1} parent=1 // pred_check_branch
      %67 = sbr.rel (0) target = $region45
    $region44: #{tpu_custom_call.1} parent=1 // pred_region
      %s69 = ssub.s32 8192, 8192
      %70 = vsyncadd [#allocation7], %s69
      %s71 = sshll.u32 [#allocation8], 4
      %s72 = int_to_ptr.vmem [resolvable:$true] %s71
      %77 = dma.hbm_to_vmem [thread:$0]  %s10, 8192, %s72, [#allocation7], 256, 256, 16
    $region45: #{tpu_custom_call.1} parent=1 // pred_fallthru
      _
    // Predicated region
    $region46: #{tpu_custom_call.1} parent=1 // pred_check
      _
    $region47: #{tpu_custom_call.1} parent=1 // pred_check_branch
      %79 = sbr.rel (0) target = $region49
    $region48: #{tpu_custom_call.1} parent=1 // pred_region
      _
    $region49: #{tpu_custom_call.1} parent=1 // pred_fallthru
      _
    // Predicated region
    $region50: #{tpu_custom_call.1} parent=1 // pred_check
      _
    $region51: #{tpu_custom_call.1} parent=1 // pred_check_branch
      %81 = sbr.rel (0) target = $region53
    $region52: #{tpu_custom_call.1} parent=1 // pred_region
      %s83 = ssub.s32 8192, 8192
      %84 = vsyncadd [#allocation10], %s83
      %s85 = sshll.u32 [#allocation9], 4
      %s86 = int_to_ptr.vmem [resolvable:$true] %s85
      %91 = dma.hbm_to_vmem [thread:$0]  %s12, 8192, %s86, [#allocation10], 256, 256, 16
    $region53: #{tpu_custom_call.1} parent=1 // pred_fallthru
      _
    // Predicated region
    $region54: #{tpu_custom_call.1} parent=1 // pred_check
      _
    $region55: #{tpu_custom_call.1} parent=1 // pred_check_branch
      %93 = sbr.rel (0) target = $region57
    $region56: #{tpu_custom_call.1} parent=1 // pred_region
      _
    $region57: #{tpu_custom_call.1} parent=1 // pred_fallthru
      _
    // Predicated region
    $region58: #{tpu_custom_call.1} parent=1 // pred_check
      _
    $region59: #{tpu_custom_call.1} parent=1 // pred_check_branch
      %95 = sbr.rel (0) target = $region61
    $region60: #{tpu_custom_call.1} parent=1 // pred_region
      _
    $region61: #{tpu_custom_call.1} parent=1 // pred_fallthru
      _
    // Predicated region
    $region62: #{tpu_custom_call.1} parent=1 // pred_check
      _
    $region63: #{tpu_custom_call.1} parent=1 // pred_check_branch
      %97 = sbr.rel (0) target = $region65
    $region64: #{tpu_custom_call.1} parent=1 // pred_region
      %98 = dma.done [#allocation4], 1536
    $region65: #{tpu_custom_call.1} parent=1 // pred_fallthru
      _
    // Predicated region
    $region66: #{tpu_custom_call.1} parent=1 // pred_check
      _
    $region67: #{tpu_custom_call.1} parent=1 // pred_check_branch
      %100 = sbr.rel (0) target = $region69
    $region68: #{tpu_custom_call.1} parent=1 // pred_region
      %101 = dma.done [#allocation7], 8192
    $region69: #{tpu_custom_call.1} parent=1 // pred_fallthru
      _
    // Predicated region
    $region70: #{tpu_custom_call.1} parent=1 // pred_check
      _
    $region71: #{tpu_custom_call.1} parent=1 // pred_check_branch
      %103 = sbr.rel (0) target = $region73
    $region72: #{tpu_custom_call.1} parent=1 // pred_region
      %104 = dma.done [#allocation7], 8192
    $region73: #{tpu_custom_call.1} parent=1 // pred_fallthru
      _
    // Predicated region
    $region74: #{tpu_custom_call.1} parent=1 // pred_check
      _
    $region75: #{tpu_custom_call.1} parent=1 // pred_check_branch
      %106 = sbr.rel (0) target = $region77
    $region76: #{tpu_custom_call.1} parent=1 // pred_region
      %107 = dma.done [#allocation10], 8192
    $region77: #{tpu_custom_call.1} parent=1 // pred_fallthru
      _
    %v108 = vld [vmem:[%s0] sm:$0xff]
    %v109 = vld [vmem:[%s0 + $0x8] sm:$0xff]
    %v110 = vld [vmem:[%s1] sm:$0x3]
    %v111 = vld [vmem:[%s5] sm:$0x3f]
    %v112 = vld [vmem:[%s5 + $0x8] sm:$0x3f]
    %v113 = vld [vmem:[#allocation3] sm:$0xff]
    %v114 = vld [vmem:[#allocation3 + $0x8] sm:$0xff]
    %v115 = vld [vmem:[#allocation3 + $0x10] sm:$0xff]
    %v116 = vld [vmem:[#allocation3 + $0x18] sm:$0xff]
    %v117 = vld [vmem:[#allocation3 + $0x20] sm:$0xff]
    %v118 = vld [vmem:[#allocation3 + $0x28] sm:$0xff]
    %v119 = vld [vmem:[#allocation3 + $0x30] sm:$0xff]
    %v120 = vld [vmem:[#allocation3 + $0x38] sm:$0xff]
    %v121 = vld [vmem:[#allocation3 + $0x40] sm:$0xff]
    %v122 = vld [vmem:[#allocation3 + $0x48] sm:$0xff]
    %v123 = vld [vmem:[#allocation3 + $0x50] sm:$0xff]
    %v124 = vld [vmem:[#allocation3 + $0x58] sm:$0xff]
    %v125 = vld [vmem:[%s7] sm:$0x3]
    %v127 = vlaneseq
    %v128 = vshrl.u32 %v127, 7
    %v129 = vsub.s32 0, %v128
    %v130 = vrot.slane %v125, %v129
    %v131 = vlaneseq
    %v132 = vshrl.u32 %v131, 7
    %v133 = vsub.s32 1, %v132
    %v134 = vrot.slane %v125, %v133
    %vm137 = vcmask 392192
    %v139 = vsel %vm137, %v110, 0
    %141 = vmatprep.subr.mxu0 %v114
    %142 = vmatpush1.msra.mxu0 %v113
    %143 = vmatprep.subr.mxu0 %v116
    %144 = vmatpush1.msra.mxu0 %v115
    %145 = vmatprep.subr.mxu0 %v118
    %146 = vmatpush1.msra.mxu0 %v117
    %147 = vmatprep.subr.mxu0 %v120
    %148 = vmatpush1.msra.mxu0 %v119
    %149 = vmatprep.subr.mxu0 %v122
    %150 = vmatpush1.msra.mxu0 %v121
    %151 = vmatprep.subr.mxu0 %v124
    %152 = vmatpush1.msra.mxu0 %v123
    %153 = vmatprep.subr.mxu0 0.0
    %154 = vmatpush1.msra.mxu0 0.0
    %155 = vmatprep.subr.mxu0 0.0
    %156 = vmatpush1.msra.mxu0 0.0
    %157 = vmatprep.subr.mxu0 0.0
    %158 = vmatpush1.msra.mxu0 0.0
    %159 = vmatprep.subr.mxu0 0.0
    %160 = vmatpush1.msra.mxu0 0.0
    %161 = vmatprep.subr.mxu0 0.0
    %162 = vmatpush1.msra.mxu0 0.0
    %163 = vmatprep.subr.mxu0 0.0
    %164 = vmatpush1.msra.mxu0 0.0
    %165 = vmatprep.subr.mxu0 0.0
    %166 = vmatpush1.msra.mxu0 0.0
    %167 = vmatprep.subr.mxu0 0.0
    %168 = vmatpush1.msra.mxu0 0.0
    %169 = vmatprep.subr.mxu0 0.0
    %170 = vmatpush1.msra.mxu0 0.0
    %171 = vmatprep.subr.mxu0 0.0
    %172 = vmatpush1.msra.mxu0 0.0
    %173 = vmatprep.subr.mxu0 0.0
    %174 = vmatpush1.msra.mxu0 0.0
    %175 = vmatprep.subr.mxu0 0.0
    %176 = vmatpush1.msra.mxu0 0.0
    %177 = vmatprep.subr.mxu0 0.0
    %178 = vmatpush1.msra.mxu0 0.0
    %179 = vmatprep.subr.mxu0 0.0
    %180 = vmatpush1.msra.mxu0 0.0
    %181 = vmatprep.subr.mxu0 0.0
    %182 = vmatpush1.msra.mxu0 0.0
    %183 = vmatprep.subr.mxu0 0.0
    %184 = vmatpush1.msra.mxu0 0.0
    %185 = vmatprep.subr.mxu0 0.0
    %186 = vmatpush1.msra.mxu0 0.0
    %187 = vmatprep.subr.mxu0 0.0
    %188 = vmatpush1.msra.mxu0 0.0
    %189 = vmatprep.subr.mxu0 0.0
    %190 = vmatpush1.msra.mxu0 0.0
    %191 = vmatprep.subr.mxu0 0.0
    %192 = vmatpush1.msra.mxu0 0.0
    %193 = vmatprep.subr.mxu0 0.0
    %194 = vmatpush1.msra.mxu0 0.0
    %195 = vmatprep.subr.mxu0 0.0
    %196 = vmatpush1.msra.mxu0 0.0
    %197 = vmatprep.subr.mxu0 0.0
    %198 = vmatpush1.msra.mxu0 0.0
    %199 = vmatprep.subr.mxu0 0.0
    %200 = vmatpush1.msra.mxu0 0.0
    %201 = vmatprep.subr.mxu0 0.0
    %202 = vmatpush1.msra.mxu0 0.0
    %203 = vmatprep.subr.mxu0 0.0
    %204 = vmatpush1.msra.mxu0 0.0
    %205 = vmatprep.mubr.f32.mxu0 0.0
    %206 = vmatmul.mubr.f32.gmra.mrb[0].mxu0 %v139
    %v207 = vpop.f32.mrb[0].mxu0
    %v208 = vadd.f32 %v130, %v207
    %v209 = vpop.f32.mrb[0].mxu0
    %v210 = vadd.f32 %v134, %v209
    %211 = vdwg.mxu0
    %v212 = vld [vmem:[%s2] sm:$0xff]
    %v213 = vld [vmem:[%s2 + $0x8] sm:$0xff]
    %vm214 = vcmask 15360
    %v216 = vsel %vm214, %v212, 0
    %v219 = vsel %vm214, %v213, 0
    %vm221 = vcmask 1041408
    %v223 = vsel %vm221, %v208, 0
    %v226 = vsel %vm221, %v210, 0
    %228 = vmatprep.subr.mxu0 %v226
    %229 = vmatpush1.msra.mxu0 %v223
    %230 = vmatprep.subr.mxu0 0.0
    %231 = vmatpush1.msra.mxu0 0.0
    %232 = vmatprep.subr.mxu0 0.0
    %233 = vmatpush1.msra.mxu0 0.0
    %234 = vmatprep.subr.mxu0 0.0
    %235 = vmatpush1.msra.mxu0 0.0
    %236 = vmatprep.subr.mxu0 0.0
    %237 = vmatpush1.msra.mxu0 0.0
    %238 = vmatprep.subr.mxu0 0.0
    %239 = vmatpush1.msra.mxu0 0.0
    %240 = vmatprep.subr.mxu0 0.0
    %241 = vmatpush1.msra.mxu0 0.0
    %242 = vmatprep.subr.mxu0 0.0
    %243 = vmatpush1.msra.mxu0 0.0
    %244 = vmatprep.subr.mxu0 0.0
    %245 = vmatpush1.msra.mxu0 0.0
    %246 = vmatprep.subr.mxu0 0.0
    %247 = vmatpush1.msra.mxu0 0.0
    %248 = vmatprep.subr.mxu0 0.0
    %249 = vmatpush1.msra.mxu0 0.0
    %250 = vmatprep.subr.mxu0 0.0
    %251 = vmatpush1.msra.mxu0 0.0
    %252 = vmatprep.subr.mxu0 0.0
    %253 = vmatpush1.msra.mxu0 0.0
    %254 = vmatprep.subr.mxu0 0.0
    %255 = vmatpush1.msra.mxu0 0.0
    %256 = vmatprep.subr.mxu0 0.0
    %257 = vmatpush1.msra.mxu0 0.0
    %258 = vmatprep.subr.mxu0 0.0
    %259 = vmatpush1.msra.mxu0 0.0
    %260 = vmatprep.subr.mxu0 0.0
    %261 = vmatpush1.msra.mxu0 0.0
    %262 = vmatprep.subr.mxu0 0.0
    %263 = vmatpush1.msra.mxu0 0.0
    %264 = vmatprep.subr.mxu0 0.0
    %265 = vmatpush1.msra.mxu0 0.0
    %266 = vmatprep.subr.mxu0 0.0
    %267 = vmatpush1.msra.mxu0 0.0
    %268 = vmatprep.subr.mxu0 0.0
    %269 = vmatpush1.msra.mxu0 0.0
    %270 = vmatprep.subr.mxu0 0.0
    %271 = vmatpush1.msra.mxu0 0.0
    %272 = vmatprep.subr.mxu0 0.0
    %273 = vmatpush1.msra.mxu0 0.0
    %274 = vmatprep.subr.mxu0 0.0
    %275 = vmatpush1.msra.mxu0 0.0
    %276 = vmatprep.subr.mxu0 0.0
    %277 = vmatpush1.msra.mxu0 0.0
    %278 = vmatprep.subr.mxu0 0.0
    %279 = vmatpush1.msra.mxu0 0.0
    %280 = vmatprep.subr.mxu0 0.0
    %281 = vmatpush1.msra.mxu0 0.0
    %282 = vmatprep.subr.mxu0 0.0
    %283 = vmatpush1.msra.mxu0 0.0
    %284 = vmatprep.subr.mxu0 0.0
    %285 = vmatpush1.msra.mxu0 0.0
    %286 = vmatprep.subr.mxu0 0.0
    %287 = vmatpush1.msra.mxu0 0.0
    %288 = vmatprep.subr.mxu0 0.0
    %289 = vmatpush1.msra.mxu0 0.0
    %290 = vmatprep.subr.mxu0 0.0
    %291 = vmatpush1.msra.mxu0 0.0
    %292 = vmatprep.mubr.f32.mxu0 0.0
    %293 = vmatmul.mubr.f32.gmra.mrb[0].mxu0 %v216
    %v294 = vpop.f32.mrb[0].mxu0
    %v295 = vadd.f32 0.0, %v294
    %v296 = vpop.f32.mrb[0].mxu0
    %v297 = vadd.f32 0.0, %v296
    %298 = vmatprep.mubr.f32.mxu0 0.0
    %299 = vmatmul.mubr.f32.gmra.mrb[0].mxu0 %v219
    %v300 = vpop.f32.mrb[0].mxu0
    %v301 = vadd.f32 0.0, %v300
    %v302 = vpop.f32.mrb[0].mxu0
    %v303 = vadd.f32 0.0, %v302
    %304 = vdwg.mxu0
    %vm305 = vcmask 48128
    %v307 = vsel %vm305, %v108, 0
    %v310 = vsel %vm305, %v109, 0
    %vm312 = vcmask 1045504
    %v314 = vsel %vm312, %v111, 0
    %v317 = vsel %vm312, %v112, 0
    %319 = vmatprep.subr.mxu0 %v317
    %320 = vmatpush1.msra.mxu0 %v314
    %321 = vmatprep.subr.mxu0 0.0
    %322 = vmatpush1.msra.mxu0 0.0
    %323 = vmatprep.subr.mxu0 0.0
    %324 = vmatpush1.msra.mxu0 0.0
    %325 = vmatprep.subr.mxu0 0.0
    %326 = vmatpush1.msra.mxu0 0.0
    %327 = vmatprep.subr.mxu0 0.0
    %328 = vmatpush1.msra.mxu0 0.0
    %329 = vmatprep.subr.mxu0 0.0
    %330 = vmatpush1.msra.mxu0 0.0
    %331 = vmatprep.subr.mxu0 0.0
    %332 = vmatpush1.msra.mxu0 0.0
    %333 = vmatprep.subr.mxu0 0.0
    %334 = vmatpush1.msra.mxu0 0.0
    %335 = vmatprep.subr.mxu0 0.0
    %336 = vmatpush1.msra.mxu0 0.0
    %337 = vmatprep.subr.mxu0 0.0
    %338 = vmatpush1.msra.mxu0 0.0
    %339 = vmatprep.subr.mxu0 0.0
    %340 = vmatpush1.msra.mxu0 0.0
    %341 = vmatprep.subr.mxu0 0.0
    %342 = vmatpush1.msra.mxu0 0.0
    %343 = vmatprep.subr.mxu0 0.0
    %344 = vmatpush1.msra.mxu0 0.0
    %345 = vmatprep.subr.mxu0 0.0
    %346 = vmatpush1.msra.mxu0 0.0
    %347 = vmatprep.subr.mxu0 0.0
    %348 = vmatpush1.msra.mxu0 0.0
    %349 = vmatprep.subr.mxu0 0.0
    %350 = vmatpush1.msra.mxu0 0.0
    %351 = vmatprep.subr.mxu0 0.0
    %352 = vmatpush1.msra.mxu0 0.0
    %353 = vmatprep.subr.mxu0 0.0
    %354 = vmatpush1.msra.mxu0 0.0
    %355 = vmatprep.subr.mxu0 0.0
    %356 = vmatpush1.msra.mxu0 0.0
    %357 = vmatprep.subr.mxu0 0.0
    %358 = vmatpush1.msra.mxu0 0.0
    %359 = vmatprep.subr.mxu0 0.0
    %360 = vmatpush1.msra.mxu0 0.0
    %361 = vmatprep.subr.mxu0 0.0
    %362 = vmatpush1.msra.mxu0 0.0
    %363 = vmatprep.subr.mxu0 0.0
    %364 = vmatpush1.msra.mxu0 0.0
    %365 = vmatprep.subr.mxu0 0.0
    %366 = vmatpush1.msra.mxu0 0.0
    %367 = vmatprep.subr.mxu0 0.0
    %368 = vmatpush1.msra.mxu0 0.0
    %369 = vmatprep.subr.mxu0 0.0
    %370 = vmatpush1.msra.mxu0 0.0
    %371 = vmatprep.subr.mxu0 0.0
    %372 = vmatpush1.msra.mxu0 0.0
    %373 = vmatprep.subr.mxu0 0.0
    %374 = vmatpush1.msra.mxu0 0.0
    %375 = vmatprep.subr.mxu0 0.0
    %376 = vmatpush1.msra.mxu0 0.0
    %377 = vmatprep.subr.mxu0 0.0
    %378 = vmatpush1.msra.mxu0 0.0
    %379 = vmatprep.subr.mxu0 0.0
    %380 = vmatpush1.msra.mxu0 0.0
    %381 = vmatprep.subr.mxu0 0.0
    %382 = vmatpush1.msra.mxu0 0.0
    %383 = vmatprep.mubr.f32.mxu0 0.0
    %384 = vmatmul.mubr.f32.gmra.mrb[0].mxu0 %v307
    %v385 = vpop.f32.mrb[0].mxu0
    %v386 = vadd.f32 %v295, %v385
    %v387 = vpop.f32.mrb[0].mxu0
    %v388 = vadd.f32 %v297, %v387
    %389 = vmatprep.mubr.f32.mxu0 0.0
    %390 = vmatmul.mubr.f32.gmra.mrb[0].mxu0 %v310
    %v391 = vpop.f32.mrb[0].mxu0
    %v392 = vadd.f32 %v301, %v391
    %v393 = vpop.f32.mrb[0].mxu0
    %v394 = vadd.f32 %v303, %v393
    %395 = vdwg.mxu0
    %v396 = vmax.f32 %v386, 0.0
    %v397 = vmax.f32 %v388, 0.0
    %v398 = vmax.f32 %v392, 0.0
    %v399 = vmax.f32 %v394, 0.0
    %v400 = vld [vmem:[#allocation6] sm:$0xff]
    %v401 = vld [vmem:[#allocation6 + $0x8] sm:$0xff]
    %v402 = vld [vmem:[#allocation6 + $0x10] sm:$0xff]
    %v403 = vld [vmem:[#allocation6 + $0x18] sm:$0xff]
    %v404 = vld [vmem:[#allocation6 + $0x20] sm:$0xff]
    %v405 = vld [vmem:[#allocation6 + $0x28] sm:$0xff]
    %v406 = vld [vmem:[#allocation6 + $0x30] sm:$0xff]
    %v407 = vld [vmem:[#allocation6 + $0x38] sm:$0xff]
    %v408 = vld [vmem:[#allocation6 + $0x40] sm:$0xff]
    %v409 = vld [vmem:[#allocation6 + $0x48] sm:$0xff]
    %v410 = vld [vmem:[#allocation6 + $0x50] sm:$0xff]
    %v411 = vld [vmem:[#allocation6 + $0x58] sm:$0xff]
    %v412 = vld [vmem:[#allocation6 + $0x60] sm:$0xff]
    %v413 = vld [vmem:[#allocation6 + $0x68] sm:$0xff]
    %v414 = vld [vmem:[#allocation6 + $0x70] sm:$0xff]
    %v415 = vld [vmem:[#allocation6 + $0x78] sm:$0xff]
    %v416 = vld [vmem:[#allocation6 + $0x80] sm:$0xff]
    %v417 = vld [vmem:[#allocation6 + $0x88] sm:$0xff]
    %v418 = vld [vmem:[#allocation6 + $0x90] sm:$0xff]
    %v419 = vld [vmem:[#allocation6 + $0x98] sm:$0xff]
    %v420 = vld [vmem:[#allocation6 + $0xa0] sm:$0xff]
    %v421 = vld [vmem:[#allocation6 + $0xa8] sm:$0xff]
    %v422 = vld [vmem:[#allocation6 + $0xb0] sm:$0xff]
    %v423 = vld [vmem:[#allocation6 + $0xb8] sm:$0xff]
    %v424 = vld [vmem:[#allocation6 + $0xc0] sm:$0xff]
    %v425 = vld [vmem:[#allocation6 + $0xc8] sm:$0xff]
    %v426 = vld [vmem:[#allocation6 + $0xd0] sm:$0xff]
    %v427 = vld [vmem:[#allocation6 + $0xd8] sm:$0xff]
    %v428 = vld [vmem:[#allocation6 + $0xe0] sm:$0xff]
    %v429 = vld [vmem:[#allocation6 + $0xe8] sm:$0xff]
    %v430 = vld [vmem:[#allocation6 + $0xf0] sm:$0xff]
    %v431 = vld [vmem:[#allocation6 + $0xf8] sm:$0xff]
    %v432 = vld [vmem:[#allocation6 + $0x100] sm:$0xff]
    %v433 = vld [vmem:[#allocation6 + $0x108] sm:$0xff]
    %v434 = vld [vmem:[#allocation6 + $0x110] sm:$0xff]
    %v435 = vld [vmem:[#allocation6 + $0x118] sm:$0xff]
    %v436 = vld [vmem:[#allocation6 + $0x120] sm:$0xff]
    %v437 = vld [vmem:[#allocation6 + $0x128] sm:$0xff]
    %v438 = vld [vmem:[#allocation6 + $0x130] sm:$0xff]
    %v439 = vld [vmem:[#allocation6 + $0x138] sm:$0xff]
    %v440 = vld [vmem:[#allocation6 + $0x140] sm:$0xff]
    %v441 = vld [vmem:[#allocation6 + $0x148] sm:$0xff]
    %v442 = vld [vmem:[#allocation6 + $0x150] sm:$0xff]
    %v443 = vld [vmem:[#allocation6 + $0x158] sm:$0xff]
    %v444 = vld [vmem:[#allocation6 + $0x160] sm:$0xff]
    %v445 = vld [vmem:[#allocation6 + $0x168] sm:$0xff]
    %v446 = vld [vmem:[#allocation6 + $0x170] sm:$0xff]
    %v447 = vld [vmem:[#allocation6 + $0x178] sm:$0xff]
    %v448 = vld [vmem:[#allocation6 + $0x180] sm:$0xff]
    %v449 = vld [vmem:[#allocation6 + $0x188] sm:$0xff]
    %v450 = vld [vmem:[#allocation6 + $0x190] sm:$0xff]
    %v451 = vld [vmem:[#allocation6 + $0x198] sm:$0xff]
    %v452 = vld [vmem:[#allocation6 + $0x1a0] sm:$0xff]
    %v453 = vld [vmem:[#allocation6 + $0x1a8] sm:$0xff]
    %v454 = vld [vmem:[#allocation6 + $0x1b0] sm:$0xff]
    %v455 = vld [vmem:[#allocation6 + $0x1b8] sm:$0xff]
    %v456 = vld [vmem:[#allocation6 + $0x1c0] sm:$0xff]
    %v457 = vld [vmem:[#allocation6 + $0x1c8] sm:$0xff]
    %v458 = vld [vmem:[#allocation6 + $0x1d0] sm:$0xff]
    %v459 = vld [vmem:[#allocation6 + $0x1d8] sm:$0xff]
    %v460 = vld [vmem:[#allocation6 + $0x1e0] sm:$0xff]
    %v461 = vld [vmem:[#allocation6 + $0x1e8] sm:$0xff]
    %v462 = vld [vmem:[#allocation6 + $0x1f0] sm:$0xff]
    %v463 = vld [vmem:[#allocation6 + $0x1f8] sm:$0xff]
    %v464 = vld [vmem:[%s9] sm:$0x3]
    %v466 = vlaneseq
    %v467 = vshrl.u32 %v466, 7
    %v468 = vsub.s32 0, %v467
    %v469 = vrot.slane %v464, %v468
    %v470 = vlaneseq
    %v471 = vshrl.u32 %v470, 7
    %v472 = vsub.s32 1, %v471
    %v473 = vrot.slane %v464, %v472
    %476 = vmatprep.subr.mxu0 %v401
    %477 = vmatpush1.msra.mxu0 %v400
    %478 = vmatprep.subr.mxu0 %v403
    %479 = vmatpush1.msra.mxu0 %v402
    %480 = vmatprep.subr.mxu0 %v405
    %481 = vmatpush1.msra.mxu0 %v404
    %482 = vmatprep.subr.mxu0 %v407
    %483 = vmatpush1.msra.mxu0 %v406
    %484 = vmatprep.subr.mxu0 %v409
    %485 = vmatpush1.msra.mxu0 %v408
    %486 = vmatprep.subr.mxu0 %v411
    %487 = vmatpush1.msra.mxu0 %v410
    %488 = vmatprep.subr.mxu0 %v413
    %489 = vmatpush1.msra.mxu0 %v412
    %490 = vmatprep.subr.mxu0 %v415
    %491 = vmatpush1.msra.mxu0 %v414
    %492 = vmatprep.subr.mxu0 %v417
    %493 = vmatpush1.msra.mxu0 %v416
    %494 = vmatprep.subr.mxu0 %v419
    %495 = vmatpush1.msra.mxu0 %v418
    %496 = vmatprep.subr.mxu0 %v421
    %497 = vmatpush1.msra.mxu0 %v420
    %498 = vmatprep.subr.mxu0 %v423
    %499 = vmatpush1.msra.mxu0 %v422
    %500 = vmatprep.subr.mxu0 %v425
    %501 = vmatpush1.msra.mxu0 %v424
    %502 = vmatprep.subr.mxu0 %v427
    %503 = vmatpush1.msra.mxu0 %v426
    %504 = vmatprep.subr.mxu0 %v429
    %505 = vmatpush1.msra.mxu0 %v428
    %506 = vmatprep.subr.mxu0 %v431
    %507 = vmatpush1.msra.mxu0 %v430
    %508 = vmatprep.subr.mxu0 %v433
    %509 = vmatpush1.msra.mxu0 %v432
    %510 = vmatprep.subr.mxu0 %v435
    %511 = vmatpush1.msra.mxu0 %v434
    %512 = vmatprep.subr.mxu0 %v437
    %513 = vmatpush1.msra.mxu0 %v436
    %514 = vmatprep.subr.mxu0 %v439
    %515 = vmatpush1.msra.mxu0 %v438
    %516 = vmatprep.subr.mxu0 %v441
    %517 = vmatpush1.msra.mxu0 %v440
    %518 = vmatprep.subr.mxu0 %v443
    %519 = vmatpush1.msra.mxu0 %v442
    %520 = vmatprep.subr.mxu0 %v445
    %521 = vmatpush1.msra.mxu0 %v444
    %522 = vmatprep.subr.mxu0 %v447
    %523 = vmatpush1.msra.mxu0 %v446
    %524 = vmatprep.subr.mxu0 %v449
    %525 = vmatpush1.msra.mxu0 %v448
    %526 = vmatprep.subr.mxu0 %v451
    %527 = vmatpush1.msra.mxu0 %v450
    %528 = vmatprep.subr.mxu0 %v453
    %529 = vmatpush1.msra.mxu0 %v452
    %530 = vmatprep.subr.mxu0 %v455
    %531 = vmatpush1.msra.mxu0 %v454
    %532 = vmatprep.subr.mxu0 %v457
    %533 = vmatpush1.msra.mxu0 %v456
    %534 = vmatprep.subr.mxu0 %v459
    %535 = vmatpush1.msra.mxu0 %v458
    %536 = vmatprep.subr.mxu0 %v461
    %537 = vmatpush1.msra.mxu0 %v460
    %538 = vmatprep.subr.mxu0 %v463
    %539 = vmatpush1.msra.mxu0 %v462
    %540 = vmatprep.mubr.f32.mxu0 %v397
    %541 = vmatmul.mubr.f32.gmra.mrb[0].mxu0 %v396
    %v542 = vpop.f32.mrb[0].mxu0
    %v543 = vadd.f32 %v469, %v542
    %v544 = vpop.f32.mrb[0].mxu0
    %v545 = vadd.f32 %v473, %v544
    %546 = vmatprep.mubr.f32.mxu0 %v399
    %547 = vmatmul.mubr.f32.gmra.mrb[0].mxu0 %v398
    %v548 = vpop.f32.mrb[0].mxu0
    %v549 = vadd.f32 %v469, %v548
    %v550 = vpop.f32.mrb[0].mxu0
    %v551 = vadd.f32 %v473, %v550
    %552 = vdwg.mxu0
    %v553 = vmax.f32 %v543, 0.0
    %v554 = vmax.f32 %v545, 0.0
    %v555 = vmax.f32 %v549, 0.0
    %v556 = vmax.f32 %v551, 0.0
    %v557 = vld [vmem:[#allocation8] sm:$0xff]
    %v558 = vld [vmem:[#allocation8 + $0x8] sm:$0xff]
    %v559 = vld [vmem:[#allocation8 + $0x10] sm:$0xff]
    %v560 = vld [vmem:[#allocation8 + $0x18] sm:$0xff]
    %v561 = vld [vmem:[#allocation8 + $0x20] sm:$0xff]
    %v562 = vld [vmem:[#allocation8 + $0x28] sm:$0xff]
    %v563 = vld [vmem:[#allocation8 + $0x30] sm:$0xff]
    %v564 = vld [vmem:[#allocation8 + $0x38] sm:$0xff]
    %v565 = vld [vmem:[#allocation8 + $0x40] sm:$0xff]
    %v566 = vld [vmem:[#allocation8 + $0x48] sm:$0xff]
    %v567 = vld [vmem:[#allocation8 + $0x50] sm:$0xff]
    %v568 = vld [vmem:[#allocation8 + $0x58] sm:$0xff]
    %v569 = vld [vmem:[#allocation8 + $0x60] sm:$0xff]
    %v570 = vld [vmem:[#allocation8 + $0x68] sm:$0xff]
    %v571 = vld [vmem:[#allocation8 + $0x70] sm:$0xff]
    %v572 = vld [vmem:[#allocation8 + $0x78] sm:$0xff]
    %v573 = vld [vmem:[#allocation8 + $0x80] sm:$0xff]
    %v574 = vld [vmem:[#allocation8 + $0x88] sm:$0xff]
    %v575 = vld [vmem:[#allocation8 + $0x90] sm:$0xff]
    %v576 = vld [vmem:[#allocation8 + $0x98] sm:$0xff]
    %v577 = vld [vmem:[#allocation8 + $0xa0] sm:$0xff]
    %v578 = vld [vmem:[#allocation8 + $0xa8] sm:$0xff]
    %v579 = vld [vmem:[#allocation8 + $0xb0] sm:$0xff]
    %v580 = vld [vmem:[#allocation8 + $0xb8] sm:$0xff]
    %v581 = vld [vmem:[#allocation8 + $0xc0] sm:$0xff]
    %v582 = vld [vmem:[#allocation8 + $0xc8] sm:$0xff]
    %v583 = vld [vmem:[#allocation8 + $0xd0] sm:$0xff]
    %v584 = vld [vmem:[#allocation8 + $0xd8] sm:$0xff]
    %v585 = vld [vmem:[#allocation8 + $0xe0] sm:$0xff]
    %v586 = vld [vmem:[#allocation8 + $0xe8] sm:$0xff]
    %v587 = vld [vmem:[#allocation8 + $0xf0] sm:$0xff]
    %v588 = vld [vmem:[#allocation8 + $0xf8] sm:$0xff]
    %v589 = vld [vmem:[#allocation8 + $0x100] sm:$0xff]
    %v590 = vld [vmem:[#allocation8 + $0x108] sm:$0xff]
    %v591 = vld [vmem:[#allocation8 + $0x110] sm:$0xff]
    %v592 = vld [vmem:[#allocation8 + $0x118] sm:$0xff]
    %v593 = vld [vmem:[#allocation8 + $0x120] sm:$0xff]
    %v594 = vld [vmem:[#allocation8 + $0x128] sm:$0xff]
    %v595 = vld [vmem:[#allocation8 + $0x130] sm:$0xff]
    %v596 = vld [vmem:[#allocation8 + $0x138] sm:$0xff]
    %v597 = vld [vmem:[#allocation8 + $0x140] sm:$0xff]
    %v598 = vld [vmem:[#allocation8 + $0x148] sm:$0xff]
    %v599 = vld [vmem:[#allocation8 + $0x150] sm:$0xff]
    %v600 = vld [vmem:[#allocation8 + $0x158] sm:$0xff]
    %v601 = vld [vmem:[#allocation8 + $0x160] sm:$0xff]
    %v602 = vld [vmem:[#allocation8 + $0x168] sm:$0xff]
    %v603 = vld [vmem:[#allocation8 + $0x170] sm:$0xff]
    %v604 = vld [vmem:[#allocation8 + $0x178] sm:$0xff]
    %v605 = vld [vmem:[#allocation8 + $0x180] sm:$0xff]
    %v606 = vld [vmem:[#allocation8 + $0x188] sm:$0xff]
    %v607 = vld [vmem:[#allocation8 + $0x190] sm:$0xff]
    %v608 = vld [vmem:[#allocation8 + $0x198] sm:$0xff]
    %v609 = vld [vmem:[#allocation8 + $0x1a0] sm:$0xff]
    %v610 = vld [vmem:[#allocation8 + $0x1a8] sm:$0xff]
    %v611 = vld [vmem:[#allocation8 + $0x1b0] sm:$0xff]
    %v612 = vld [vmem:[#allocation8 + $0x1b8] sm:$0xff]
    %v613 = vld [vmem:[#allocation8 + $0x1c0] sm:$0xff]
    %v614 = vld [vmem:[#allocation8 + $0x1c8] sm:$0xff]
    %v615 = vld [vmem:[#allocation8 + $0x1d0] sm:$0xff]
    %v616 = vld [vmem:[#allocation8 + $0x1d8] sm:$0xff]
    %v617 = vld [vmem:[#allocation8 + $0x1e0] sm:$0xff]
    %v618 = vld [vmem:[#allocation8 + $0x1e8] sm:$0xff]
    %v619 = vld [vmem:[#allocation8 + $0x1f0] sm:$0xff]
    %v620 = vld [vmem:[#allocation8 + $0x1f8] sm:$0xff]
    %v621 = vld [vmem:[%s11] sm:$0x3]
    %v623 = vlaneseq
    %v624 = vshrl.u32 %v623, 7
    %v625 = vsub.s32 0, %v624
    %v626 = vrot.slane %v621, %v625
    %v627 = vlaneseq
    %v628 = vshrl.u32 %v627, 7
    %v629 = vsub.s32 1, %v628
    %v630 = vrot.slane %v621, %v629
    %633 = vmatprep.subr.mxu0 %v558
    %634 = vmatpush1.msra.mxu0 %v557
    %635 = vmatprep.subr.mxu0 %v560
    %636 = vmatpush1.msra.mxu0 %v559
    %637 = vmatprep.subr.mxu0 %v562
    %638 = vmatpush1.msra.mxu0 %v561
    %639 = vmatprep.subr.mxu0 %v564
    %640 = vmatpush1.msra.mxu0 %v563
    %641 = vmatprep.subr.mxu0 %v566
    %642 = vmatpush1.msra.mxu0 %v565
    %643 = vmatprep.subr.mxu0 %v568
    %644 = vmatpush1.msra.mxu0 %v567
    %645 = vmatprep.subr.mxu0 %v570
    %646 = vmatpush1.msra.mxu0 %v569
    %647 = vmatprep.subr.mxu0 %v572
    %648 = vmatpush1.msra.mxu0 %v571
    %649 = vmatprep.subr.mxu0 %v574
    %650 = vmatpush1.msra.mxu0 %v573
    %651 = vmatprep.subr.mxu0 %v576
    %652 = vmatpush1.msra.mxu0 %v575
    %653 = vmatprep.subr.mxu0 %v578
    %654 = vmatpush1.msra.mxu0 %v577
    %655 = vmatprep.subr.mxu0 %v580
    %656 = vmatpush1.msra.mxu0 %v579
    %657 = vmatprep.subr.mxu0 %v582
    %658 = vmatpush1.msra.mxu0 %v581
    %659 = vmatprep.subr.mxu0 %v584
    %660 = vmatpush1.msra.mxu0 %v583
    %661 = vmatprep.subr.mxu0 %v586
    %662 = vmatpush1.msra.mxu0 %v585
    %663 = vmatprep.subr.mxu0 %v588
    %664 = vmatpush1.msra.mxu0 %v587
    %665 = vmatprep.subr.mxu0 %v590
    %666 = vmatpush1.msra.mxu0 %v589
    %667 = vmatprep.subr.mxu0 %v592
    %668 = vmatpush1.msra.mxu0 %v591
    %669 = vmatprep.subr.mxu0 %v594
    %670 = vmatpush1.msra.mxu0 %v593
    %671 = vmatprep.subr.mxu0 %v596
    %672 = vmatpush1.msra.mxu0 %v595
    %673 = vmatprep.subr.mxu0 %v598
    %674 = vmatpush1.msra.mxu0 %v597
    %675 = vmatprep.subr.mxu0 %v600
    %676 = vmatpush1.msra.mxu0 %v599
    %677 = vmatprep.subr.mxu0 %v602
    %678 = vmatpush1.msra.mxu0 %v601
    %679 = vmatprep.subr.mxu0 %v604
    %680 = vmatpush1.msra.mxu0 %v603
    %681 = vmatprep.subr.mxu0 %v606
    %682 = vmatpush1.msra.mxu0 %v605
    %683 = vmatprep.subr.mxu0 %v608
    %684 = vmatpush1.msra.mxu0 %v607
    %685 = vmatprep.subr.mxu0 %v610
    %686 = vmatpush1.msra.mxu0 %v609
    %687 = vmatprep.subr.mxu0 %v612
    %688 = vmatpush1.msra.mxu0 %v611
    %689 = vmatprep.subr.mxu0 %v614
    %690 = vmatpush1.msra.mxu0 %v613
    %691 = vmatprep.subr.mxu0 %v616
    %692 = vmatpush1.msra.mxu0 %v615
    %693 = vmatprep.subr.mxu0 %v618
    %694 = vmatpush1.msra.mxu0 %v617
    %695 = vmatprep.subr.mxu0 %v620
    %696 = vmatpush1.msra.mxu0 %v619
    %697 = vmatprep.mubr.f32.mxu0 %v554
    %698 = vmatmul.mubr.f32.gmra.mrb[0].mxu0 %v553
    %v699 = vpop.f32.mrb[0].mxu0
    %v700 = vadd.f32 %v626, %v699
    %v701 = vpop.f32.mrb[0].mxu0
    %v702 = vadd.f32 %v630, %v701
    %703 = vmatprep.mubr.f32.mxu0 %v556
    %704 = vmatmul.mubr.f32.gmra.mrb[0].mxu0 %v555
    %v705 = vpop.f32.mrb[0].mxu0
    %v706 = vadd.f32 %v626, %v705
    %v707 = vpop.f32.mrb[0].mxu0
    %v708 = vadd.f32 %v630, %v707
    %709 = vdwg.mxu0
    %v710 = vmax.f32 %v700, 0.0
    %v711 = vmax.f32 %v702, 0.0
    %v712 = vmax.f32 %v706, 0.0
    %v713 = vmax.f32 %v708, 0.0
    %v714 = vld [vmem:[#allocation9] sm:$0xff]
    %v715 = vld [vmem:[#allocation9 + $0x8] sm:$0xff]
    %v716 = vld [vmem:[#allocation9 + $0x10] sm:$0xff]
    %v717 = vld [vmem:[#allocation9 + $0x18] sm:$0xff]
    %v718 = vld [vmem:[#allocation9 + $0x20] sm:$0xff]
    %v719 = vld [vmem:[#allocation9 + $0x28] sm:$0xff]
    %v720 = vld [vmem:[#allocation9 + $0x30] sm:$0xff]
    %v721 = vld [vmem:[#allocation9 + $0x38] sm:$0xff]
    %v722 = vld [vmem:[#allocation9 + $0x40] sm:$0xff]
    %v723 = vld [vmem:[#allocation9 + $0x48] sm:$0xff]
    %v724 = vld [vmem:[#allocation9 + $0x50] sm:$0xff]
    %v725 = vld [vmem:[#allocation9 + $0x58] sm:$0xff]
    %v726 = vld [vmem:[#allocation9 + $0x60] sm:$0xff]
    %v727 = vld [vmem:[#allocation9 + $0x68] sm:$0xff]
    %v728 = vld [vmem:[#allocation9 + $0x70] sm:$0xff]
    %v729 = vld [vmem:[#allocation9 + $0x78] sm:$0xff]
    %v730 = vld [vmem:[#allocation9 + $0x80] sm:$0xff]
    %v731 = vld [vmem:[#allocation9 + $0x88] sm:$0xff]
    %v732 = vld [vmem:[#allocation9 + $0x90] sm:$0xff]
    %v733 = vld [vmem:[#allocation9 + $0x98] sm:$0xff]
    %v734 = vld [vmem:[#allocation9 + $0xa0] sm:$0xff]
    %v735 = vld [vmem:[#allocation9 + $0xa8] sm:$0xff]
    %v736 = vld [vmem:[#allocation9 + $0xb0] sm:$0xff]
    %v737 = vld [vmem:[#allocation9 + $0xb8] sm:$0xff]
    %v738 = vld [vmem:[#allocation9 + $0xc0] sm:$0xff]
    %v739 = vld [vmem:[#allocation9 + $0xc8] sm:$0xff]
    %v740 = vld [vmem:[#allocation9 + $0xd0] sm:$0xff]
    %v741 = vld [vmem:[#allocation9 + $0xd8] sm:$0xff]
    %v742 = vld [vmem:[#allocation9 + $0xe0] sm:$0xff]
    %v743 = vld [vmem:[#allocation9 + $0xe8] sm:$0xff]
    %v744 = vld [vmem:[#allocation9 + $0xf0] sm:$0xff]
    %v745 = vld [vmem:[#allocation9 + $0xf8] sm:$0xff]
    %v746 = vld [vmem:[#allocation9 + $0x100] sm:$0xff]
    %v747 = vld [vmem:[#allocation9 + $0x108] sm:$0xff]
    %v748 = vld [vmem:[#allocation9 + $0x110] sm:$0xff]
    %v749 = vld [vmem:[#allocation9 + $0x118] sm:$0xff]
    %v750 = vld [vmem:[#allocation9 + $0x120] sm:$0xff]
    %v751 = vld [vmem:[#allocation9 + $0x128] sm:$0xff]
    %v752 = vld [vmem:[#allocation9 + $0x130] sm:$0xff]
    %v753 = vld [vmem:[#allocation9 + $0x138] sm:$0xff]
    %v754 = vld [vmem:[#allocation9 + $0x140] sm:$0xff]
    %v755 = vld [vmem:[#allocation9 + $0x148] sm:$0xff]
    %v756 = vld [vmem:[#allocation9 + $0x150] sm:$0xff]
    %v757 = vld [vmem:[#allocation9 + $0x158] sm:$0xff]
    %v758 = vld [vmem:[#allocation9 + $0x160] sm:$0xff]
    %v759 = vld [vmem:[#allocation9 + $0x168] sm:$0xff]
    %v760 = vld [vmem:[#allocation9 + $0x170] sm:$0xff]
    %v761 = vld [vmem:[#allocation9 + $0x178] sm:$0xff]
    %v762 = vld [vmem:[#allocation9 + $0x180] sm:$0xff]
    %v763 = vld [vmem:[#allocation9 + $0x188] sm:$0xff]
    %v764 = vld [vmem:[#allocation9 + $0x190] sm:$0xff]
    %v765 = vld [vmem:[#allocation9 + $0x198] sm:$0xff]
    %v766 = vld [vmem:[#allocation9 + $0x1a0] sm:$0xff]
    %v767 = vld [vmem:[#allocation9 + $0x1a8] sm:$0xff]
    %v768 = vld [vmem:[#allocation9 + $0x1b0] sm:$0xff]
    %v769 = vld [vmem:[#allocation9 + $0x1b8] sm:$0xff]
    %v770 = vld [vmem:[#allocation9 + $0x1c0] sm:$0xff]
    %v771 = vld [vmem:[#allocation9 + $0x1c8] sm:$0xff]
    %v772 = vld [vmem:[#allocation9 + $0x1d0] sm:$0xff]
    %v773 = vld [vmem:[#allocation9 + $0x1d8] sm:$0xff]
    %v774 = vld [vmem:[#allocation9 + $0x1e0] sm:$0xff]
    %v775 = vld [vmem:[#allocation9 + $0x1e8] sm:$0xff]
    %v776 = vld [vmem:[#allocation9 + $0x1f0] sm:$0xff]
    %v777 = vld [vmem:[#allocation9 + $0x1f8] sm:$0xff]
    %v778 = vld [vmem:[%s13] sm:$0x3]
    %v780 = vlaneseq
    %v781 = vshrl.u32 %v780, 7
    %v782 = vsub.s32 0, %v781
    %v783 = vrot.slane %v778, %v782
    %v784 = vlaneseq
    %v785 = vshrl.u32 %v784, 7
    %v786 = vsub.s32 1, %v785
    %v787 = vrot.slane %v778, %v786
    %790 = vmatprep.subr.mxu0 %v715
    %791 = vmatpush1.msra.mxu0 %v714
    %792 = vmatprep.subr.mxu0 %v717
    %793 = vmatpush1.msra.mxu0 %v716
    %794 = vmatprep.subr.mxu0 %v719
    %795 = vmatpush1.msra.mxu0 %v718
    %796 = vmatprep.subr.mxu0 %v721
    %797 = vmatpush1.msra.mxu0 %v720
    %798 = vmatprep.subr.mxu0 %v723
    %799 = vmatpush1.msra.mxu0 %v722
    %800 = vmatprep.subr.mxu0 %v725
    %801 = vmatpush1.msra.mxu0 %v724
    %802 = vmatprep.subr.mxu0 %v727
    %803 = vmatpush1.msra.mxu0 %v726
    %804 = vmatprep.subr.mxu0 %v729
    %805 = vmatpush1.msra.mxu0 %v728
    %806 = vmatprep.subr.mxu0 %v731
    %807 = vmatpush1.msra.mxu0 %v730
    %808 = vmatprep.subr.mxu0 %v733
    %809 = vmatpush1.msra.mxu0 %v732
    %810 = vmatprep.subr.mxu0 %v735
    %811 = vmatpush1.msra.mxu0 %v734
    %812 = vmatprep.subr.mxu0 %v737
    %813 = vmatpush1.msra.mxu0 %v736
    %814 = vmatprep.subr.mxu0 %v739
    %815 = vmatpush1.msra.mxu0 %v738
    %816 = vmatprep.subr.mxu0 %v741
    %817 = vmatpush1.msra.mxu0 %v740
    %818 = vmatprep.subr.mxu0 %v743
    %819 = vmatpush1.msra.mxu0 %v742
    %820 = vmatprep.subr.mxu0 %v745
    %821 = vmatpush1.msra.mxu0 %v744
    %822 = vmatprep.subr.mxu0 %v747
    %823 = vmatpush1.msra.mxu0 %v746
    %824 = vmatprep.subr.mxu0 %v749
    %825 = vmatpush1.msra.mxu0 %v748
    %826 = vmatprep.subr.mxu0 %v751
    %827 = vmatpush1.msra.mxu0 %v750
    %828 = vmatprep.subr.mxu0 %v753
    %829 = vmatpush1.msra.mxu0 %v752
    %830 = vmatprep.subr.mxu0 %v755
    %831 = vmatpush1.msra.mxu0 %v754
    %832 = vmatprep.subr.mxu0 %v757
    %833 = vmatpush1.msra.mxu0 %v756
    %834 = vmatprep.subr.mxu0 %v759
    %835 = vmatpush1.msra.mxu0 %v758
    %836 = vmatprep.subr.mxu0 %v761
    %837 = vmatpush1.msra.mxu0 %v760
    %838 = vmatprep.subr.mxu0 %v763
    %839 = vmatpush1.msra.mxu0 %v762
    %840 = vmatprep.subr.mxu0 %v765
    %841 = vmatpush1.msra.mxu0 %v764
    %842 = vmatprep.subr.mxu0 %v767
    %843 = vmatpush1.msra.mxu0 %v766
    %844 = vmatprep.subr.mxu0 %v769
    %845 = vmatpush1.msra.mxu0 %v768
    %846 = vmatprep.subr.mxu0 %v771
    %847 = vmatpush1.msra.mxu0 %v770
    %848 = vmatprep.subr.mxu0 %v773
    %849 = vmatpush1.msra.mxu0 %v772
    %850 = vmatprep.subr.mxu0 %v775
    %851 = vmatpush1.msra.mxu0 %v774
    %852 = vmatprep.subr.mxu0 %v777
    %853 = vmatpush1.msra.mxu0 %v776
    %854 = vmatprep.mubr.f32.mxu0 %v711
    %855 = vmatmul.mubr.f32.gmra.mrb[0].mxu0 %v710
    %v856 = vpop.f32.mrb[0].mxu0
    %v857 = vadd.f32 %v783, %v856
    %v858 = vpop.f32.mrb[0].mxu0
    %v859 = vadd.f32 %v787, %v858
    %860 = vmatprep.mubr.f32.mxu0 %v713
    %861 = vmatmul.mubr.f32.gmra.mrb[0].mxu0 %v712
    %v862 = vpop.f32.mrb[0].mxu0
    %v863 = vadd.f32 %v783, %v862
    %v864 = vpop.f32.mrb[0].mxu0
    %v865 = vadd.f32 %v787, %v864
    %866 = vdwg.mxu0
    %v867 = vmax.f32 %v857, 0.0
    %v868 = vmax.f32 %v859, 0.0
    %v869 = vmax.f32 %v863, 0.0
    %v870 = vmax.f32 %v865, 0.0
    %v871 = vld [vmem:[%s4] sm:$0xff]
    %v872 = vld [vmem:[%s4 + $0x8] sm:$0xff]
    %v873 = vld [vmem:[%s4 + $0x10] sm:$0xff]
    %v874 = vld [vmem:[%s4 + $0x18] sm:$0xff]
    %v875 = vmul.f32 %v867, %v871
    %v876 = vmul.f32 %v868, %v872
    %v877 = vmul.f32 %v869, %v873
    %v878 = vmul.f32 %v870, %v874
    %v879 = vld [vmem:[%s3] sm:$0x3]
    %vm880 = vcmask 130048
    %v882 = vsel %vm880, %v879, 0
    %884 = vmatprep.subr.mxu0 %v876
    %885 = vmatpush1.msra.mxu0 %v875
    %886 = vmatprep.subr.mxu0 %v878
    %887 = vmatpush1.msra.mxu0 %v877
    %888 = vmatprep.subr.mxu0 0.0
    %889 = vmatpush1.msra.mxu0 0.0
    %890 = vmatprep.subr.mxu0 0.0
    %891 = vmatpush1.msra.mxu0 0.0
    %892 = vmatprep.subr.mxu0 0.0
    %893 = vmatpush1.msra.mxu0 0.0
    %894 = vmatprep.subr.mxu0 0.0
    %895 = vmatpush1.msra.mxu0 0.0
    %896 = vmatprep.subr.mxu0 0.0
    %897 = vmatpush1.msra.mxu0 0.0
    %898 = vmatprep.subr.mxu0 0.0
    %899 = vmatpush1.msra.mxu0 0.0
    %900 = vmatprep.subr.mxu0 0.0
    %901 = vmatpush1.msra.mxu0 0.0
    %902 = vmatprep.subr.mxu0 0.0
    %903 = vmatpush1.msra.mxu0 0.0
    %904 = vmatprep.subr.mxu0 0.0
    %905 = vmatpush1.msra.mxu0 0.0
    %906 = vmatprep.subr.mxu0 0.0
    %907 = vmatpush1.msra.mxu0 0.0
    %908 = vmatprep.subr.mxu0 0.0
    %909 = vmatpush1.msra.mxu0 0.0
    %910 = vmatprep.subr.mxu0 0.0
    %911 = vmatpush1.msra.mxu0 0.0
    %912 = vmatprep.subr.mxu0 0.0
    %913 = vmatpush1.msra.mxu0 0.0
    %914 = vmatprep.subr.mxu0 0.0
    %915 = vmatpush1.msra.mxu0 0.0
    %916 = vmatprep.subr.mxu0 0.0
    %917 = vmatpush1.msra.mxu0 0.0
    %918 = vmatprep.subr.mxu0 0.0
    %919 = vmatpush1.msra.mxu0 0.0
    %920 = vmatprep.subr.mxu0 0.0
    %921 = vmatpush1.msra.mxu0 0.0
    %922 = vmatprep.subr.mxu0 0.0
    %923 = vmatpush1.msra.mxu0 0.0
    %924 = vmatprep.subr.mxu0 0.0
    %925 = vmatpush1.msra.mxu0 0.0
    %926 = vmatprep.subr.mxu0 0.0
    %927 = vmatpush1.msra.mxu0 0.0
    %928 = vmatprep.subr.mxu0 0.0
    %929 = vmatpush1.msra.mxu0 0.0
    %930 = vmatprep.subr.mxu0 0.0
    %931 = vmatpush1.msra.mxu0 0.0
    %932 = vmatprep.subr.mxu0 0.0
    %933 = vmatpush1.msra.mxu0 0.0
    %934 = vmatprep.subr.mxu0 0.0
    %935 = vmatpush1.msra.mxu0 0.0
    %936 = vmatprep.subr.mxu0 0.0
    %937 = vmatpush1.msra.mxu0 0.0
    %938 = vmatprep.subr.mxu0 0.0
    %939 = vmatpush1.msra.mxu0 0.0
    %940 = vmatprep.subr.mxu0 0.0
    %941 = vmatpush1.msra.mxu0 0.0
    %942 = vmatprep.subr.mxu0 0.0
    %943 = vmatpush1.msra.mxu0 0.0
    %944 = vmatprep.subr.mxu0 0.0
    %945 = vmatpush1.msra.mxu0 0.0
    %946 = vmatprep.subr.mxu0 0.0
    %947 = vmatpush1.msra.mxu0 0.0
    %948 = vmatprep.mubr.f32.mxu0 0.0
    %949 = vmatmul.mubr.f32.gmra.mrb[0].mxu0 %v882
    %v950 = vpop.f32.mrb[0].mxu0
    %v951 = vadd.f32 0.0, %v950
    %v952 = vpop.f32.mrb[0].mxu0
    %v953 = vadd.f32 0.0, %v952
    %954 = vdwg.mxu0
    %v955 = vsel %vm221, %v951, 0.0
    %v956 = vsel %vm221, %v953, 0.0
    %v957 = vadd.f32 %v955, %v956
    %958 = vadd.xlane.f32.xlu0 %v957
    %v959 = vpop.xlane.xlu0 %958
    %v960 = vld [vmem:[#allocation2] sm:$0x1]
    %v962 = vlaneseq
    %v963 = vshrl.u32 %v962, 7
    %v964 = vsub.s32 0, %v963
    %v965 = vrot.slane %v960, %v964
    %v967 = vadd.f32 %v959, %v965
    %969 = vset.pattern.permute.xlu0 0
    %970 = vperm.xlu0 %969, %v967
    %v971 = vpop.permute.xlu0 %970
    %973 = vst [vmem:[#allocation11] sm:$0x3] %v971
    // Predicated region
    $region78: #{tpu_custom_call.1} parent=1 // pred_check
      _
    $region79: #{tpu_custom_call.1} parent=1 // pred_check_branch
      %975 = sbr.rel (0) target = $region81
    $region80: #{tpu_custom_call.1} parent=1 // pred_region
      %s977 = ssub.s32 32, 32
      %978 = vsyncadd [#allocation5], %s977
      %s980 = sshll.u32 [#allocation11], 4
      %s981 = int_to_ptr.vmem [resolvable:$true] %s980
      %983 = dma.vmem_to_hbm [thread:$0]  %s981, 32, %s15, [#allocation5]
    $region81: #{tpu_custom_call.1} parent=1 // pred_fallthru
      _
    // Predicated region
    $region82: #{tpu_custom_call.1} parent=1 // pred_check
      _
    $region83: #{tpu_custom_call.1} parent=1 // pred_check_branch
      %985 = sbr.rel (0) target = $region85
    $region84: #{tpu_custom_call.1} parent=1 // pred_region
      %986 = dma.done [#allocation5], 32
    $region85: #{tpu_custom_call.1} parent=1 // pred_fallthru
      _
    %987 = vsyncpa [#allocation4], 1
    %988 = vsyncpa [#allocation7], 1
    %989 = vsyncpa [#allocation10], 1
    %990 = vsyncpa [#allocation5], 1

</llo_original>
